<compile_context>
chip_gen: v5e
topology: v5e:2x2
jax: 0.10.0
libtpu: 0.0.40
codegen_flags: <defaults>
</compile_context>

<pallas_src>
import jax
import jax.numpy as jnp
from jax.experimental import pallas as pl
from jax.experimental.pallas import tpu as pltpu


def _fm_kernel(uv_ref, iv_ref, bias_ref, out_ref):
    # uv_ref / iv_ref : (D, block_B) f32 in VMEM (batch on lanes)
    # bias_ref        : (1, block_B) f32 in VMEM (user_b + item_b + global_b)
    # out_ref         : (1, block_B) f32 in VMEM
    dot = jnp.sum(uv_ref[...] * iv_ref[...], axis=0, keepdims=True)  # (1, block_B)
    out_ref[...] = dot + bias_ref[...]


def _round_up(x, m):
    return ((x + m - 1) // m) * m


def fm_forward(user_vec, item_vec, bias, *, max_block_b=16384):
    """FM hot path.

    user_vec, item_vec : (B, D) f32 gathered embedding rows.
    bias               : (B,)   f32 pre-combined user_b + item_b + global_b.
    Returns (B,) f32 predictions.
    """
    B, D = user_vec.shape

    # Batch tile: as large as possible (HBM-bound kernel), multiple of 128
    # lanes, capped so the double-buffered footprint stays well under the
    # v7x 32 MiB scoped-VMEM default (2 inputs x 2 bufs x D*block_B*4B ~ 8 MiB
    # at block_B = 16384, D = 32).
    block_b = min(max_block_b, _round_up(B, 128))
    b_pad = _round_up(B, block_b)
    pad = b_pad - B

    # Layout plumbing in the wrapper: transpose to (D, B) and zero-pad the
    # batch axis up to a whole number of tiles.
    uv_t = jnp.pad(user_vec.astype(jnp.float32).T, ((0, 0), (0, pad)))
    iv_t = jnp.pad(item_vec.astype(jnp.float32).T, ((0, 0), (0, pad)))
    bias_p = jnp.pad(bias.astype(jnp.float32).reshape(1, B), ((0, 0), (0, pad)))

    grid = (b_pad // block_b,)

    out = pl.pallas_call(
        _fm_kernel,
        out_shape=jax.ShapeDtypeStruct((1, b_pad), jnp.float32),
        grid=grid,
        in_specs=[
            pl.BlockSpec((D, block_b), lambda i: (0, i)),   # user_vec.T tile
            pl.BlockSpec((D, block_b), lambda i: (0, i)),   # item_vec.T tile
            pl.BlockSpec((1, block_b), lambda i: (0, i)),   # combined bias tile
        ],
        out_specs=pl.BlockSpec((1, block_b), lambda i: (0, i)),
        compiler_params=pltpu.CompilerParams(
            dimension_semantics=("parallel",),
        ),
    )(uv_t, iv_t, bias_p)

    return out[0, :B]


class FMParams:
    """Deterministic parameter construction mirroring the PyTorch __init__."""

    def __init__(self, num_users, num_items, embedding_dim=32, seed=0):
        k = jax.random.PRNGKey(seed)
        k1, k2, k3, k4 = jax.random.split(k, 4)
        # nn.Embedding default init: N(0, 1).  Kept f32 to match the PyTorch
        # module's numerics (bf16 storage would halve HBM traffic if desired).
        self.user_embed = jax.random.normal(k1, (num_users, embedding_dim), jnp.float32)
        self.item_embed = jax.random.normal(k2, (num_items, embedding_dim), jnp.float32)
        self.user_bias = jax.random.normal(k3, (num_users, 1), jnp.float32)
        self.item_bias = jax.random.normal(k4, (num_items, 1), jnp.float32)
        # nn.Parameter(torch.zeros(1))
        self.global_bias = jnp.zeros((1,), jnp.float32)

    def __call__(self, user, item):
        # Gather (embedding lookup) is glue — plain JAX.
        user_vec = jnp.take(self.user_embed, user, axis=0)    # (B, D)
        item_vec = jnp.take(self.item_embed, item, axis=0)    # (B, D)
        user_b = jnp.take(self.user_bias, user, axis=0)[:, 0]  # (B,)
        item_b = jnp.take(self.item_bias, item, axis=0)[:, 0]  # (B,)
        # Fold all bias terms into one lane-dense stream for the kernel.
        bias = user_b + item_b + self.global_bias[0]
        # Hot path (mul + reduce + bias add) in the Pallas kernel.
        return fm_forward(user_vec, item_vec, bias)


if __name__ == "__main__":
    num_users, num_items, embedding_dim, batch = 10, 12, 32, 8

    fm = FMParams(num_users, num_items, embedding_dim, seed=0)

    key = jax.random.PRNGKey(0)
    ku, ki = jax.random.split(key)
    user = jax.random.randint(ku, (batch,), 0, num_users, dtype=jnp.int32)
    item = jax.random.randint(ki, (batch,), 0, num_items, dtype=jnp.int32)

    pred = fm(user, item)
    pred = jax.block_until_ready(pred)

    # Pure-JAX reference check of the Pallas kernel.
    uv = jnp.take(fm.user_embed, user, axis=0)
    iv = jnp.take(fm.item_embed, item, axis=0)
    ref = (jnp.sum(uv * iv, axis=1)
           + jnp.take(fm.user_bias, user, axis=0)[:, 0]
           + jnp.take(fm.item_bias, item, axis=0)[:, 0]
           + fm.global_bias[0])
    assert pred.shape == (batch,)
    assert jnp.allclose(pred, ref, atol=1e-5, rtol=1e-5)

    print("KERNEL_OK")
</pallas_src>

<mosaic_0001>
module attributes {stable_mosaic.version = 11 : i64} {
  func.func @_fm_kernel(%arg0: i32, %arg1: memref<32x128xf32, #tpu.memory_space<vmem>>, %arg2: memref<32x128xf32, #tpu.memory_space<vmem>>, %arg3: memref<1x128xf32, #tpu.memory_space<vmem>>, %arg4: memref<1x128xf32, #tpu.memory_space<vmem>>) attributes {dimension_semantics = [#tpu.dimension_semantics<parallel>], iteration_bounds = array<i64: 1>, scalar_prefetch = 0 : i64, scratch_operands = 0 : i64, tpu.core_type = #tpu.core_type<tc>, window_params = [{transform_indices = @transform_0, window_bounds = array<i64: 32, 128>}, {transform_indices = @transform_1, window_bounds = array<i64: 32, 128>}, {transform_indices = @transform_2, window_bounds = array<i64: 1, 128>}, {transform_indices = @transform_3, window_bounds = array<i64: 1, 128>}]} {
    %c0 = arith.constant 0 : index
    %c0_0 = arith.constant 0 : index
    %0 = vector.load %arg1[%c0, %c0_0] : memref<32x128xf32, #tpu.memory_space<vmem>>, vector<32x128xf32>
    %c0_1 = arith.constant 0 : index
    %c0_2 = arith.constant 0 : index
    %1 = vector.load %arg2[%c0_1, %c0_2] : memref<32x128xf32, #tpu.memory_space<vmem>>, vector<32x128xf32>
    %2 = arith.mulf %0, %1 : vector<32x128xf32>
    %cst = arith.constant dense<0.000000e+00> : vector<128xf32>
    %3 = vector.multi_reduction <add>, %2, %cst [0] : vector<32x128xf32> to vector<128xf32>
    %4 = vector.shape_cast %3 : vector<128xf32> to vector<1x128xf32>
    %c0_3 = arith.constant 0 : index
    %c0_4 = arith.constant 0 : index
    %5 = vector.load %arg3[%c0_3, %c0_4] : memref<1x128xf32, #tpu.memory_space<vmem>>, vector<1x128xf32>
    %6 = arith.addf %4, %5 : vector<1x128xf32>
    %c0_5 = arith.constant 0 : index
    %c0_6 = arith.constant 0 : index
    %7 = vector.load %arg4[%c0_5, %c0_6] : memref<1x128xf32, #tpu.memory_space<vmem>>, vector<1x128xf32>
    tpu.vector_store %arg4[%c0_5, %c0_6], %6 {strides = array<i32>} : memref<1x128xf32, #tpu.memory_space<vmem>>, vector<1x128xf32>,
    return
  }
  func.func @transform_0(%arg0: i32) -> (i32, i32) {
    %c0_i32 = arith.constant 0 : i32
    %c0_i32_0 = arith.constant 0 : i32
    return %c0_i32, %arg0 : i32, i32
  }
  func.func @transform_1(%arg0: i32) -> (i32, i32) {
    %c0_i32 = arith.constant 0 : i32
    %c0_i32_0 = arith.constant 0 : i32
    return %c0_i32, %arg0 : i32, i32
  }
  func.func @transform_2(%arg0: i32) -> (i32, i32) {
    %c0_i32 = arith.constant 0 : i32
    %c0_i32_0 = arith.constant 0 : i32
    return %c0_i32, %arg0 : i32, i32
  }
  func.func @transform_3(%arg0: i32) -> (i32, i32) {
    %c0_i32 = arith.constant 0 : i32
    %c0_i32_0 = arith.constant 0 : i32
    return %c0_i32, %arg0 : i32, i32
  }
}

</mosaic_0001>

<llo_original>
// kernel: tpu_custom_call.1
$region0: #{tpu_custom_call.1}
  #allocation0 [shape = 'u32[]', space=smem, size = 0x4, offset = 0x4, fixed_abs, tag = 'smem constant byte address 0x4 - core index']
  #allocation1 [shape = 'u32[72,128]{1,0:T(1,128)}', space=vmem, size = 0x9000, scoped, tag = 'internal scratch']
  %s0 = inlined_call_operand.hbm [shape: f32[32,128], index: 0, kind: input, shape index: {}]
  %s1 = inlined_call_operand.hbm [shape: f32[32,128], index: 1, kind: input, shape index: {}]
  %s2 = inlined_call_operand.vmem [shape: f32[1,128], index: 2, kind: input, shape index: {}]
  %s3 = inlined_call_operand.hbm [shape: f32[1,128], index: 3, kind: output, shape index: {}]
  %s4 = sld [smem:[#allocation0]]
  $region30: #{tpu_custom_call.1} parent=0
    _
  %s6 = ssub.s32 1, %s4
  %s7 = scalar_select 0, %s6, %s4
  $region1: #{tpu_custom_call.1} parent=0
    #allocation2 [shape = 'u8[16384]{0}', space=vmem, size = 0x4000, scoped, tag = 'input window, operand 0, single buffered']
    #allocation3 [shape = 's32[1]{0}', space=sflag, size = 0x4, scoped, tag = 'scoped memory for tpu_custom_call.1']
    #allocation4 [shape = 's32[1]{0}', space=sflag, size = 0x4, scoped, tag = 'scoped memory for tpu_custom_call.1']
    #allocation5 [shape = 'u8[16384]{0}', space=vmem, size = 0x4000, scoped, tag = 'input window, operand 1, single buffered']
    #allocation6 [shape = 's32[1]{0}', space=sflag, size = 0x4, scoped, tag = 'scoped memory for tpu_custom_call.1']
    #allocation7 [shape = 'u8[512]{0}', space=vmem, size = 0x400, scoped, tag = 'output window, operand 0, single buffered']
    %8 = vsyncpa [#allocation3], 0
    %9 = vsyncpa [#allocation6], 0
    %10 = vsyncpa [#allocation4], 0
    // Predicated region
    $region2: #{tpu_custom_call.1} parent=1 // pred_check
      _
    $region3: #{tpu_custom_call.1} parent=1 // pred_check_branch
      %12 = sbr.rel (0) target = $region5
    $region4: #{tpu_custom_call.1} parent=1 // pred_region
      %14 = vsyncadd [#allocation3], 0
      %s15 = sshll.u32 %s0, 4
      %s16 = int_to_ptr.hbm [resolvable:$true] %s15
      %s17 = sshll.u32 [#allocation2], 4
      %s18 = int_to_ptr.vmem [resolvable:$true] %s17
      %23 = dma.hbm_to_vmem [thread:$0]  %s16, 512, %s18, [#allocation3], 128, 128, 8
    $region5: #{tpu_custom_call.1} parent=1 // pred_fallthru
      _
    // Predicated region
    $region6: #{tpu_custom_call.1} parent=1 // pred_check
      _
    $region7: #{tpu_custom_call.1} parent=1 // pred_check_branch
      %25 = sbr.rel (0) target = $region9
    $region8: #{tpu_custom_call.1} parent=1 // pred_region
      %27 = vsyncadd [#allocation6], 0
      %s28 = sshll.u32 %s1, 4
      %s29 = int_to_ptr.hbm [resolvable:$true] %s28
      %s30 = sshll.u32 [#allocation5], 4
      %s31 = int_to_ptr.vmem [resolvable:$true] %s30
      %36 = dma.hbm_to_vmem [thread:$0]  %s29, 512, %s31, [#allocation6], 128, 128, 8
    $region9: #{tpu_custom_call.1} parent=1 // pred_fallthru
      _
    // Predicated region
    $region10: #{tpu_custom_call.1} parent=1 // pred_check
      _
    $region11: #{tpu_custom_call.1} parent=1 // pred_check_branch
      %38 = sbr.rel (0) target = $region13
    $region12: #{tpu_custom_call.1} parent=1 // pred_region
      _
    $region13: #{tpu_custom_call.1} parent=1 // pred_fallthru
      _
    // Predicated region
    $region14: #{tpu_custom_call.1} parent=1 // pred_check
      _
    $region15: #{tpu_custom_call.1} parent=1 // pred_check_branch
      %40 = sbr.rel (0) target = $region17
    $region16: #{tpu_custom_call.1} parent=1 // pred_region
      %42 = dma.done [#allocation3], 512
    $region17: #{tpu_custom_call.1} parent=1 // pred_fallthru
      _
    // Predicated region
    $region18: #{tpu_custom_call.1} parent=1 // pred_check
      _
    $region19: #{tpu_custom_call.1} parent=1 // pred_check_branch
      %44 = sbr.rel (0) target = $region21
    $region20: #{tpu_custom_call.1} parent=1 // pred_region
      %46 = dma.done [#allocation6], 512
    $region21: #{tpu_custom_call.1} parent=1 // pred_fallthru
      _
    %v47 = vld [vmem:[#allocation2] sm:$0xff]
    %v48 = vld [vmem:[#allocation2 + $0x8] sm:$0xff]
    %v49 = vld [vmem:[#allocation2 + $0x10] sm:$0xff]
    %v50 = vld [vmem:[#allocation2 + $0x18] sm:$0xff]
    %v51 = vld [vmem:[#allocation5] sm:$0xff]
    %v52 = vld [vmem:[#allocation5 + $0x8] sm:$0xff]
    %v53 = vld [vmem:[#allocation5 + $0x10] sm:$0xff]
    %v54 = vld [vmem:[#allocation5 + $0x18] sm:$0xff]
    %v55 = vmul.f32 %v47, %v51
    %v56 = vmul.f32 %v48, %v52
    %v57 = vmul.f32 %v49, %v53
    %v58 = vmul.f32 %v50, %v54
    %v59 = vadd.f32 %v55, %v56
    %v60 = vadd.f32 %v59, %v57
    %v61 = vadd.f32 %v60, %v58
    %v62 = vrot.slane %v61, 4
    %v63 = vadd.f32 %v61, %v62
    %v64 = vrot.slane %v63, 2
    %v65 = vadd.f32 %v63, %v64
    %v66 = vrot.slane %v65, 1
    %v67 = vadd.f32 %v65, %v66
    %v68 = vld [vmem:[%s2] sm:$0x1]
    %v69 = vadd.f32 %v67, %v68
    %70 = vst [vmem:[#allocation7] sm:$0x1] %v69
    // Predicated region
    $region22: #{tpu_custom_call.1} parent=1 // pred_check
      _
    $region23: #{tpu_custom_call.1} parent=1 // pred_check_branch
      %72 = sbr.rel (0) target = $region25
    $region24: #{tpu_custom_call.1} parent=1 // pred_region
      %74 = vsyncadd [#allocation4], 0
      %s76 = sshll.u32 [#allocation7], 4
      %s77 = int_to_ptr.vmem [resolvable:$true] %s76
      %s78 = sshll.u32 %s3, 4
      %s79 = int_to_ptr.hbm [resolvable:$true] %s78
      %81 = dma.vmem_to_hbm [thread:$0]  %s77, 16, %s79, [#allocation4]
    $region25: #{tpu_custom_call.1} parent=1 // pred_fallthru
      _
    // Predicated region
    $region26: #{tpu_custom_call.1} parent=1 // pred_check
      _
    $region27: #{tpu_custom_call.1} parent=1 // pred_check_branch
      %83 = sbr.rel (0) target = $region29
    $region28: #{tpu_custom_call.1} parent=1 // pred_region
      %85 = dma.done [#allocation4], 16
    $region29: #{tpu_custom_call.1} parent=1 // pred_fallthru
      _
    %86 = vsyncpa [#allocation3], 1
    %87 = vsyncpa [#allocation6], 1
    %88 = vsyncpa [#allocation4], 1

</llo_original>
